<compile_context>
chip_gen: v7x
topology: tpu7x:2x2x1
jax: 0.10.0
libtpu: 0.0.40
codegen_flags: <defaults>
</compile_context>

<pallas_src>
import math
import functools

import jax
import jax.numpy as jnp
import numpy as np
from jax.experimental import pallas as pl
from jax.experimental.pallas import tpu as pltpu


def _vmem_limit_bytes():
    """Generation-aware scoped-VMEM limit: ~65% of physical VMEM (≈41 MiB on v7x's
    64 MiB, ≈83 MiB on v5e/v6e's 128 MiB), leaving headroom for double-buffered DMA
    slots and Mosaic internal scratch."""
    cap = 128 * 1024 * 1024
    try:
        info = pltpu.get_tpu_info()
        cap = int(getattr(info, "vmem_capacity_bytes", cap)) or cap
    except Exception:
        pass
    return min((cap * 13) // 20, 100 * 1024 * 1024)


# --------------------------------------------------------------------------- #
# Kernel 1a: GroupNorm32 statistics -> per-channel scale / shift               #
# --------------------------------------------------------------------------- #
def gn_stats_kernel(x_ref, gamma_ref, beta_ref, scale_ref, shift_ref,
                    s1_ref, s2_ref, *, num_groups, eps, total_t):
    ti = pl.program_id(1)

    @pl.when(ti == 0)
    def _init():
        s1_ref[...] = jnp.zeros_like(s1_ref)
        s2_ref[...] = jnp.zeros_like(s2_ref)

    x = x_ref[0].astype(jnp.float32)                        # (C, tt)
    # Lane (T) reductions on the activation in its native (C, T) layout.
    s1_ref[...] += jnp.sum(x, axis=1, keepdims=True)        # (C, 1)
    s2_ref[...] += jnp.sum(x * x, axis=1, keepdims=True)    # (C, 1)

    @pl.when(ti == pl.num_programs(1) - 1)
    def _finalize():
        C = x_ref.shape[1]
        cpg = C // num_groups
        n = jnp.float32(cpg * total_t)
        # Only these tiny (C, 1) vectors are re-laid-out to (G, cpg).
        s1 = s1_ref[...].reshape(num_groups, cpg)
        s2 = s2_ref[...].reshape(num_groups, cpg)
        g1 = jnp.sum(s1, axis=1, keepdims=True)             # (G, 1)
        g2 = jnp.sum(s2, axis=1, keepdims=True)
        mean = g1 / n
        var = jnp.maximum(g2 / n - mean * mean, 0.0)        # clamp one-pass variance
        inv = jax.lax.rsqrt(var + eps)
        gamma = gamma_ref[...].reshape(num_groups, cpg)
        beta = beta_ref[...].reshape(num_groups, cpg)
        sc = inv * gamma                                     # (G, cpg)
        sh = beta - mean * sc
        scale_ref[0] = sc.reshape(C, 1)
        shift_ref[0] = sh.reshape(C, 1)


# --------------------------------------------------------------------------- #
# Kernel 1b: GroupNorm affine + qkv 1x1 conv, tiled over T                     #
# --------------------------------------------------------------------------- #
def norm_qkv_kernel(x_ref, scale_ref, shift_ref, wqkv_ref, bqkv_ref,
                    q_ref, k_ref, v_ref, *, num_heads):
    x = x_ref[0].astype(jnp.float32)                        # (C, tt)
    C, tt = x.shape
    ch = C // num_heads

    xn = x * scale_ref[0] + shift_ref[0]                    # GroupNorm, stays (C, tt)

    # qkv 1x1 conv: bf16 MXU operands, f32 accumulation.  Weight rows were permuted
    # in the wrapper to head-major [Q_all | K_all | V_all] with scale**2 folded into
    # the Q rows / bias.
    qkv = jnp.dot(wqkv_ref[...], xn.astype(wqkv_ref.dtype),
                  preferred_element_type=jnp.float32) + bqkv_ref[...]   # (3C, tt) f32

    # (C, tt) -> (H, ch, tt): pure sublane split, lane axis (T) untouched.
    q_ref[0] = qkv[0:C].reshape(num_heads, ch, tt).astype(q_ref.dtype)
    k_ref[0] = qkv[C:2 * C].reshape(num_heads, ch, tt).astype(k_ref.dtype)
    v_ref[0] = qkv[2 * C:3 * C].reshape(num_heads, ch, tt).astype(v_ref.dtype)


# --------------------------------------------------------------------------- #
# Kernel 2: flash attention (online softmax over key tiles) + proj + residual  #
# --------------------------------------------------------------------------- #
def flash_attn_proj_kernel(q_ref, k_ref, v_ref, x_ref, wproj_ref, bproj_ref,
                           o_ref, m_sc, l_sc, acc_sc):
    ki = pl.program_id(2)

    @pl.when(ki == 0)
    def _init():
        m_sc[...] = jnp.full(m_sc.shape, -jnp.inf, m_sc.dtype)
        l_sc[...] = jnp.zeros_like(l_sc)
        acc_sc[...] = jnp.zeros_like(acc_sc)

    q = q_ref[0]                                            # (H, ch, tq) bf16, scale folded
    k = k_ref[0]                                            # (H, ch, tk) bf16
    v = v_ref[0]                                            # (H, ch, tk) bf16

    # s[h, s, t] = sum_c k[h, c, s] * q[h, c, t]  -> (H, tk, tq), lane axis = tq.
    s = jax.lax.dot_general(k, q, (((1,), (1,)), ((0,), (0,))),
                            preferred_element_type=jnp.float32)

    m_prev = m_sc[...]                                      # (H, 1, tq)
    m_new = jnp.maximum(m_prev, jnp.max(s, axis=1, keepdims=True))
    alpha = jnp.exp(m_prev - m_new)
    # NOTE: exp kept in f32 for all generations; m/l/acc accumulation stays f32.
    p = jnp.exp(s - m_new)                                  # (H, tk, tq) f32
    l_sc[...] = alpha * l_sc[...] + jnp.sum(p, axis=1, keepdims=True)
    m_sc[...] = m_new

    # acc[h, c, t] += sum_s v[h, c, s] * p[h, s, t]   (probs cast to bf16 for MXU)
    pv = jax.lax.dot_general(v, p.astype(v.dtype), (((2,), (1,)), ((0,), (0,))),
                             preferred_element_type=jnp.float32)        # (H, ch, tq)
    acc_sc[...] = alpha * acc_sc[...] + pv

    @pl.when(ki == pl.num_programs(2) - 1)
    def _finalize():
        heads, ch, tq = acc_sc.shape
        C = heads * ch
        inv_l = pl.reciprocal(l_sc[...], approx=True)       # EUP reciprocal
        # (H, ch, tq) -> (C, tq): sublane merge only, no XLU transpose.
        att = (acc_sc[...] * inv_l).reshape(C, tq)
        h_proj = jnp.dot(wproj_ref[...], att.astype(wproj_ref.dtype),
                         preferred_element_type=jnp.float32) + bproj_ref[...]
        o_ref[0] = (x_ref[0].astype(jnp.float32) + h_proj).astype(o_ref.dtype)


# --------------------------------------------------------------------------- #
# Wrapper                                                                      #
# --------------------------------------------------------------------------- #
def _pick_tile(T, target):
    """Largest multiple-of-128 divisor of T that is <= target (or T itself)."""
    if T <= target:
        return T
    t = (min(target, T) // 128) * 128
    while t >= 128:
        if T % t == 0:
            return t
        t -= 128
    return T


def attention_block_forward(x, params, *, num_heads, num_groups=32, eps=1e-5,
                            q_tile=512, k_tile=512, t_tile=1024):
    B, C, H, W = x.shape
    T = H * W
    assert C % num_groups == 0 and C % num_heads == 0
    ch = C // num_heads
    xr = x.reshape(B, C, T)
    vmem_limit = _vmem_limit_bytes()

    # ---- parameter prep (wrapper-side, once) ----
    gamma = params['norm_w'].reshape(C, 1).astype(jnp.float32)
    beta = params['norm_b'].reshape(C, 1).astype(jnp.float32)

    # Re-order qkv rows from per-head [q|k|v] (legacy order) into head-major
    # [Q_all | K_all | V_all], and fold the attention scale**2 into the Q rows/bias.
    w = params['qkv_w'].reshape(3 * C, C)
    b = params['qkv_b'].reshape(3 * C, 1)
    heads_idx = np.repeat(np.arange(num_heads), ch)
    cc = np.tile(np.arange(ch), num_heads)
    q_rows = heads_idx * 3 * ch + cc
    perm = np.concatenate([q_rows, q_rows + ch, q_rows + 2 * ch])
    scale2 = 1.0 / math.sqrt(ch)                      # (ch ** -0.25) ** 2
    row_scale = np.ones((3 * C, 1), np.float32)
    row_scale[:C] = scale2
    wqkv = (w[perm] * row_scale).astype(jnp.bfloat16)
    bqkv = (b[perm] * row_scale).astype(jnp.float32)

    wproj = params['proj_w'].reshape(C, C).astype(jnp.bfloat16)
    bproj = params['proj_b'].reshape(C, 1).astype(jnp.float32)

    tt = _pick_tile(T, t_tile)
    nt = T // tt

    # ---- Kernel 1a: GroupNorm statistics ----
    gn_scale, gn_shift = pl.pallas_call(
        functools.partial(gn_stats_kernel, num_groups=num_groups, eps=eps, total_t=T),
        out_shape=(jax.ShapeDtypeStruct((B, C, 1), jnp.float32),
                   jax.ShapeDtypeStruct((B, C, 1), jnp.float32)),
        grid_spec=pltpu.PrefetchScalarGridSpec(
            num_scalar_prefetch=0,
            grid=(B, nt),
            in_specs=[
                pl.BlockSpec((1, C, tt), lambda b, t: (b, 0, t)),
                pl.BlockSpec((C, 1), lambda b, t: (0, 0)),
                pl.BlockSpec((C, 1), lambda b, t: (0, 0)),
            ],
            out_specs=[
                pl.BlockSpec((1, C, 1), lambda b, t: (b, 0, 0)),
                pl.BlockSpec((1, C, 1), lambda b, t: (b, 0, 0)),
            ],
            scratch_shapes=[pltpu.VMEM((C, 1), jnp.float32),
                            pltpu.VMEM((C, 1), jnp.float32)],
        ),
        compiler_params=pltpu.CompilerParams(
            dimension_semantics=("parallel", "arbitrary"),
            vmem_limit_bytes=vmem_limit),
    )(xr, gamma, beta)

    # ---- Kernel 1b: normalize + qkv projection, tiled over T ----
    # (q/k/v all emitted in lane-dense (B, H, ch, T) layout; no transposes.)
    q, k, v = pl.pallas_call(
        functools.partial(norm_qkv_kernel, num_heads=num_heads),
        out_shape=(jax.ShapeDtypeStruct((B, num_heads, ch, T), jnp.bfloat16),
                   jax.ShapeDtypeStruct((B, num_heads, ch, T), jnp.bfloat16),
                   jax.ShapeDtypeStruct((B, num_heads, ch, T), jnp.bfloat16)),
        grid_spec=pltpu.PrefetchScalarGridSpec(
            num_scalar_prefetch=0,
            grid=(B, nt),
            in_specs=[
                pl.BlockSpec((1, C, tt), lambda b, t: (b, 0, t)),
                pl.BlockSpec((1, C, 1), lambda b, t: (b, 0, 0)),
                pl.BlockSpec((1, C, 1), lambda b, t: (b, 0, 0)),
                pl.BlockSpec((3 * C, C), lambda b, t: (0, 0)),
                pl.BlockSpec((3 * C, 1), lambda b, t: (0, 0)),
            ],
            out_specs=[
                pl.BlockSpec((1, num_heads, ch, tt), lambda b, t: (b, 0, 0, t)),
                pl.BlockSpec((1, num_heads, ch, tt), lambda b, t: (b, 0, 0, t)),
                pl.BlockSpec((1, num_heads, ch, tt), lambda b, t: (b, 0, 0, t)),
            ],
        ),
        compiler_params=pltpu.CompilerParams(
            dimension_semantics=("parallel", "parallel"),
            vmem_limit_bytes=vmem_limit),
    )(xr, gn_scale, gn_shift, wqkv, bqkv)

    # ---- Kernel 2: flash attention + proj_out + residual ----
    tq = _pick_tile(T, q_tile)
    tk = _pick_tile(T, k_tile)
    nq, nk = T // tq, T // tk

    out = pl.pallas_call(
        flash_attn_proj_kernel,
        out_shape=jax.ShapeDtypeStruct((B, C, T), x.dtype),
        grid_spec=pltpu.PrefetchScalarGridSpec(
            num_scalar_prefetch=0,
            grid=(B, nq, nk),
            in_specs=[
                pl.BlockSpec((1, num_heads, ch, tq), lambda b, qi, ki: (b, 0, 0, qi)),
                pl.BlockSpec((1, num_heads, ch, tk), lambda b, qi, ki: (b, 0, 0, ki)),
                pl.BlockSpec((1, num_heads, ch, tk), lambda b, qi, ki: (b, 0, 0, ki)),
                pl.BlockSpec((1, C, tq), lambda b, qi, ki: (b, 0, qi)),   # residual x
                pl.BlockSpec((C, C), lambda b, qi, ki: (0, 0)),           # proj weight
                pl.BlockSpec((C, 1), lambda b, qi, ki: (0, 0)),           # proj bias
            ],
            out_specs=pl.BlockSpec((1, C, tq), lambda b, qi, ki: (b, 0, qi)),
            scratch_shapes=[
                pltpu.VMEM((num_heads, 1, tq), jnp.float32),    # running max m
                pltpu.VMEM((num_heads, 1, tq), jnp.float32),    # running denom l
                pltpu.VMEM((num_heads, ch, tq), jnp.float32),   # output accumulator
            ],
        ),
        compiler_params=pltpu.CompilerParams(
            dimension_semantics=("parallel", "parallel", "arbitrary"),
            vmem_limit_bytes=vmem_limit),
    )(q, k, v, xr, wproj, bproj)

    return out.reshape(B, C, H, W)


# --------------------------------------------------------------------------- #
# Pure-JAX f32 reference (mirrors the PyTorch forward semantics)               #
# --------------------------------------------------------------------------- #
def attention_block_reference(x, params, *, num_heads, num_groups=32, eps=1e-5):
    B, C, H, W = x.shape
    T = H * W
    xr = x.reshape(B, C, T).astype(jnp.float32)

    xg = xr.reshape(B, num_groups, C // num_groups, T)
    mean = jnp.mean(xg, axis=(2, 3), keepdims=True)
    var = jnp.mean(jnp.square(xg - mean), axis=(2, 3), keepdims=True)
    xn = ((xg - mean) / jnp.sqrt(var + eps)).reshape(B, C, T)
    xn = xn * params['norm_w'].reshape(1, C, 1) + params['norm_b'].reshape(1, C, 1)

    wqkv = params['qkv_w'].reshape(3 * C, C)
    qkv = jnp.einsum('oc,bct->bot', wqkv, xn) + params['qkv_b'].reshape(1, 3 * C, 1)

    ch = C // num_heads
    scale = 1.0 / math.sqrt(math.sqrt(ch))
    qkv_h = qkv.reshape(B * num_heads, 3 * ch, T)
    q, k, v = qkv_h[:, :ch], qkv_h[:, ch:2 * ch], qkv_h[:, 2 * ch:]
    w = jnp.einsum('bct,bcs->bts', q * scale, k * scale)
    w = jax.nn.softmax(w, axis=-1)
    a = jnp.einsum('bts,bcs->bct', w, v).reshape(B, C, T)

    wproj = params['proj_w'].reshape(C, C)
    h_proj = jnp.einsum('oc,bct->bot', wproj, a) + params['proj_b'].reshape(1, C, 1)
    return (xr + h_proj).reshape(B, C, H, W)


# --------------------------------------------------------------------------- #
# Test driver                                                                  #
# --------------------------------------------------------------------------- #
def _make_params(key, C):
    kq, kqb, kp, kpb = jax.random.split(key, 4)
    # NOTE: zero_module() zero-inits proj_out in the reference; use nonzero values
    # here so the full attention path is exercised.
    return {
        'norm_w': jnp.ones((C,), jnp.float32),
        'norm_b': jnp.zeros((C,), jnp.float32),
        'qkv_w': 0.05 * jax.random.normal(kq, (3 * C, C, 1), dtype=jnp.float32),
        'qkv_b': 0.01 * jax.random.normal(kqb, (3 * C,), dtype=jnp.float32),
        'proj_w': 0.05 * jax.random.normal(kp, (C, C, 1), dtype=jnp.float32),
        'proj_b': 0.01 * jax.random.normal(kpb, (C,), dtype=jnp.float32),
    }


def _run_case(key, B, C, Hs, Ws, num_heads, num_groups, q_tile, k_tile, t_tile):
    kx, kp = jax.random.split(key)
    x = jax.random.normal(kx, (B, C, Hs, Ws), dtype=jnp.float32)
    params = _make_params(kp, C)

    out = attention_block_forward(x, params, num_heads=num_heads,
                                  num_groups=num_groups, q_tile=q_tile,
                                  k_tile=k_tile, t_tile=t_tile)
    out = jax.block_until_ready(out)
    ref = attention_block_reference(x, params, num_heads=num_heads,
                                    num_groups=num_groups)
    # bf16 MXU operands + approx reciprocal -> slightly looser tolerance than pure f32
    np.testing.assert_allclose(np.asarray(out), np.asarray(ref), rtol=2e-2, atol=2e-2)


if __name__ == "__main__":
    key = jax.random.PRNGKey(0)
    k1, k2 = jax.random.split(key)

    # Case 1: module-default style shapes (single tile everywhere).
    _run_case(k1, B=2, C=32, Hs=8, Ws=8, num_heads=4, num_groups=32,
              q_tile=512, k_tile=512, t_tile=1024)

    # Case 2: exercises multi-tile GroupNorm stats (nt=2), tiled norm+qkv, and
    # multi-tile online softmax (nq=2, nk=2) with cpg>1 GroupNorm.
    _run_case(k2, B=1, C=64, Hs=16, Ws=16, num_heads=2, num_groups=32,
              q_tile=128, k_tile=128, t_tile=128)

    print("KERNEL_OK")
</pallas_src>

<mosaic_0001>
module attributes {stable_mosaic.version = 11 : i64} {
  func.func @gn_stats_kernel(%arg0: i32, %arg1: i32, %arg2: memref<1x32x64xf32, #tpu.memory_space<vmem>>, %arg3: memref<32x1xf32, #tpu.memory_space<vmem>>, %arg4: memref<32x1xf32, #tpu.memory_space<vmem>>, %arg5: memref<1x32x1xf32, #tpu.memory_space<vmem>>, %arg6: memref<1x32x1xf32, #tpu.memory_space<vmem>>, %arg7: memref<32x1xf32, #tpu.memory_space<vmem>>, %arg8: memref<32x1xf32, #tpu.memory_space<vmem>>) attributes {dimension_semantics = [#tpu.dimension_semantics<parallel>, #tpu.dimension_semantics<arbitrary>], iteration_bounds = array<i64: 2, 1>, scalar_prefetch = 0 : i64, scratch_operands = 2 : i64, tpu.core_type = #tpu.core_type<tc>, window_params = [{transform_indices = @transform_0, window_bounds = array<i64: 1, 32, 64>}, {pipeline_mode = #tpu.pipeline_mode<synchronous>, transform_indices = @transform_1, window_bounds = array<i64: 32, 1>}, {pipeline_mode = #tpu.pipeline_mode<synchronous>, transform_indices = @transform_2, window_bounds = array<i64: 32, 1>}, {transform_indices = @transform_3, window_bounds = array<i64: 1, 32, 1>}, {transform_indices = @transform_4, window_bounds = array<i64: 1, 32, 1>}]} {
    %c0_i32 = arith.constant 0 : i32
    %0 = arith.cmpi eq, %arg1, %c0_i32 : i32
    %1 = arith.extui %0 : i1 to i32
    %c0_i32_0 = arith.constant 0 : i32
    %2 = arith.cmpi ne, %1, %c0_i32_0 : i32
    scf.if %2 {
      %cst_14 = arith.constant 0.000000e+00 : f32
      %19 = vector.broadcast %cst_14 : f32 to vector<32x1xf32>
      %c0_15 = arith.constant 0 : index
      %c0_16 = arith.constant 0 : index
      %20 = vector.load %arg7[%c0_15, %c0_16] : memref<32x1xf32, #tpu.memory_space<vmem>>, vector<32x1xf32>
      tpu.vector_store %arg7[%c0_15, %c0_16], %19 {strides = array<i32>} : memref<32x1xf32, #tpu.memory_space<vmem>>, vector<32x1xf32>,
      %cst_17 = arith.constant 0.000000e+00 : f32
      %21 = vector.broadcast %cst_17 : f32 to vector<32x1xf32>
      %c0_18 = arith.constant 0 : index
      %c0_19 = arith.constant 0 : index
      %22 = vector.load %arg8[%c0_18, %c0_19] : memref<32x1xf32, #tpu.memory_space<vmem>>, vector<32x1xf32>
      tpu.vector_store %arg8[%c0_18, %c0_19], %21 {strides = array<i32>} : memref<32x1xf32, #tpu.memory_space<vmem>>, vector<32x1xf32>,
    } else {
    }
    %c0 = arith.constant 0 : index
    %c0_1 = arith.constant 0 : index
    %c0_2 = arith.constant 0 : index
    %3 = vector.load %arg2[%c0, %c0_1, %c0_2] : memref<1x32x64xf32, #tpu.memory_space<vmem>>, vector<1x32x64xf32>
    %4 = vector.shape_cast %3 : vector<1x32x64xf32> to vector<32x64xf32>
    %c0_3 = arith.constant 0 : index
    %c0_4 = arith.constant 0 : index
    %5 = vector.load %arg7[%c0_3, %c0_4] : memref<32x1xf32, #tpu.memory_space<vmem>>, vector<32x1xf32>
    %cst = arith.constant dense<0.000000e+00> : vector<32xf32>
    %6 = vector.multi_reduction <add>, %4, %cst [1] : vector<32x64xf32> to vector<32xf32>
    %7 = vector.shape_cast %6 : vector<32xf32> to vector<32x1xf32>
    %8 = arith.addf %5, %7 : vector<32x1xf32>
    %c0_5 = arith.constant 0 : index
    %c0_6 = arith.constant 0 : index
    %9 = vector.load %arg7[%c0_5, %c0_6] : memref<32x1xf32, #tpu.memory_space<vmem>>, vector<32x1xf32>
    tpu.vector_store %arg7[%c0_5, %c0_6], %8 {strides = array<i32>} : memref<32x1xf32, #tpu.memory_space<vmem>>, vector<32x1xf32>,
    %c0_7 = arith.constant 0 : index
    %c0_8 = arith.constant 0 : index
    %10 = vector.load %arg8[%c0_7, %c0_8] : memref<32x1xf32, #tpu.memory_space<vmem>>, vector<32x1xf32>
    %11 = arith.mulf %4, %4 : vector<32x64xf32>
    %cst_9 = arith.constant dense<0.000000e+00> : vector<32xf32>
    %12 = vector.multi_reduction <add>, %11, %cst_9 [1] : vector<32x64xf32> to vector<32xf32>
    %13 = vector.shape_cast %12 : vector<32xf32> to vector<32x1xf32>
    %14 = arith.addf %10, %13 : vector<32x1xf32>
    %c0_10 = arith.constant 0 : index
    %c0_11 = arith.constant 0 : index
    %15 = vector.load %arg8[%c0_10, %c0_11] : memref<32x1xf32, #tpu.memory_space<vmem>>, vector<32x1xf32>
    tpu.vector_store %arg8[%c0_10, %c0_11], %14 {strides = array<i32>} : memref<32x1xf32, #tpu.memory_space<vmem>>, vector<32x1xf32>,
    %c0_i32_12 = arith.constant 0 : i32
    %16 = arith.cmpi eq, %arg1, %c0_i32_12 : i32
    %17 = arith.extui %16 : i1 to i32
    %c0_i32_13 = arith.constant 0 : i32
    %18 = arith.cmpi ne, %17, %c0_i32_13 : i32
    scf.if %18 {
      %c0_14 = arith.constant 0 : index
      %c0_15 = arith.constant 0 : index
      %19 = vector.load %arg7[%c0_14, %c0_15] : memref<32x1xf32, #tpu.memory_space<vmem>>, vector<32x1xf32>
      %c0_16 = arith.constant 0 : index
      %c0_17 = arith.constant 0 : index
      %20 = vector.load %arg8[%c0_16, %c0_17] : memref<32x1xf32, #tpu.memory_space<vmem>>, vector<32x1xf32>
      %cst_18 = arith.constant dense<0.000000e+00> : vector<32xf32>
      %21 = vector.multi_reduction <add>, %19, %cst_18 [1] : vector<32x1xf32> to vector<32xf32>
      %22 = vector.shape_cast %21 : vector<32xf32> to vector<32x1xf32>
      %cst_19 = arith.constant dense<0.000000e+00> : vector<32xf32>
      %23 = vector.multi_reduction <add>, %20, %cst_19 [1] : vector<32x1xf32> to vector<32xf32>
      %24 = vector.shape_cast %23 : vector<32xf32> to vector<32x1xf32>
      %cst_20 = arith.constant 6.400000e+01 : f32
      %25 = vector.broadcast %cst_20 : f32 to vector<32x1xf32>
      %26 = arith.divf %22, %25 : vector<32x1xf32>
      %cst_21 = arith.constant 6.400000e+01 : f32
      %27 = vector.broadcast %cst_21 : f32 to vector<32x1xf32>
      %28 = arith.divf %24, %27 : vector<32x1xf32>
      %29 = arith.mulf %26, %26 : vector<32x1xf32>
      %30 = arith.subf %28, %29 : vector<32x1xf32>
      %cst_22 = arith.constant 0.000000e+00 : f32
      %31 = vector.broadcast %cst_22 : f32 to vector<32x1xf32>
      %32 = arith.maximumf %30, %31 : vector<32x1xf32>
      %cst_23 = arith.constant 9.99999974E-6 : f32
      %33 = vector.broadcast %cst_23 : f32 to vector<32x1xf32>
      %34 = arith.addf %32, %33 : vector<32x1xf32>
      %35 = math.rsqrt %34 : vector<32x1xf32>
      %c0_24 = arith.constant 0 : index
      %c0_25 = arith.constant 0 : index
      %36 = vector.load %arg3[%c0_24, %c0_25] : memref<32x1xf32, #tpu.memory_space<vmem>>, vector<32x1xf32>
      %c0_26 = arith.constant 0 : index
      %c0_27 = arith.constant 0 : index
      %37 = vector.load %arg4[%c0_26, %c0_27] : memref<32x1xf32, #tpu.memory_space<vmem>>, vector<32x1xf32>
      %38 = arith.mulf %35, %36 : vector<32x1xf32>
      %39 = arith.mulf %26, %38 : vector<32x1xf32>
      %40 = arith.subf %37, %39 : vector<32x1xf32>
      %c0_28 = arith.constant 0 : index
      %c0_29 = arith.constant 0 : index
      %c0_30 = arith.constant 0 : index
      %41 = vector.load %arg5[%c0_28, %c0_29, %c0_30] : memref<1x32x1xf32, #tpu.memory_space<vmem>>, vector<1x32x1xf32>
      %42 = vector.shape_cast %41 : vector<1x32x1xf32> to vector<32x1xf32>
      %43 = vector.shape_cast %38 : vector<32x1xf32> to vector<1x32x1xf32>
      tpu.vector_store %arg5[%c0_28, %c0_29, %c0_30], %43 {strides = array<i32>} : memref<1x32x1xf32, #tpu.memory_space<vmem>>, vector<1x32x1xf32>,
      %c0_31 = arith.constant 0 : index
      %c0_32 = arith.constant 0 : index
      %c0_33 = arith.constant 0 : index
      %44 = vector.load %arg6[%c0_31, %c0_32, %c0_33] : memref<1x32x1xf32, #tpu.memory_space<vmem>>, vector<1x32x1xf32>
      %45 = vector.shape_cast %44 : vector<1x32x1xf32> to vector<32x1xf32>
      %46 = vector.shape_cast %40 : vector<32x1xf32> to vector<1x32x1xf32>
      tpu.vector_store %arg6[%c0_31, %c0_32, %c0_33], %46 {strides = array<i32>} : memref<1x32x1xf32, #tpu.memory_space<vmem>>, vector<1x32x1xf32>,
    } else {
    }
    return
  }
  func.func @transform_0(%arg0: i32, %arg1: i32) -> (i32, i32, i32) {
    %c0_i32 = arith.constant 0 : i32
    %c0_i32_0 = arith.constant 0 : i32
    return %arg0, %c0_i32, %arg1 : i32, i32, i32
  }
  func.func @transform_1(%arg0: i32, %arg1: i32) -> (i32, i32) {
    %c0_i32 = arith.constant 0 : i32
    %c0_i32_0 = arith.constant 0 : i32
    %c0_i32_1 = arith.constant 0 : i32
    return %c0_i32, %c0_i32_0 : i32, i32
  }
  func.func @transform_2(%arg0: i32, %arg1: i32) -> (i32, i32) {
    %c0_i32 = arith.constant 0 : i32
    %c0_i32_0 = arith.constant 0 : i32
    %c0_i32_1 = arith.constant 0 : i32
    return %c0_i32, %c0_i32_0 : i32, i32
  }
  func.func @transform_3(%arg0: i32, %arg1: i32) -> (i32, i32, i32) {
    %c0_i32 = arith.constant 0 : i32
    %c0_i32_0 = arith.constant 0 : i32
    %c0_i32_1 = arith.constant 0 : i32
    return %arg0, %c0_i32, %c0_i32_0 : i32, i32, i32
  }
  func.func @transform_4(%arg0: i32, %arg1: i32) -> (i32, i32, i32) {
    %c0_i32 = arith.constant 0 : i32
    %c0_i32_0 = arith.constant 0 : i32
    %c0_i32_1 = arith.constant 0 : i32
    return %arg0, %c0_i32, %c0_i32_0 : i32, i32, i32
  }
}

</mosaic_0001>

<llo_original>
// kernel: tpu_custom_call.1
$region0: #{tpu_custom_call.1}
  #allocation0 [shape = 'u32[]', space=smem, size = 0x4, offset = 0x4, fixed_abs, tag = 'smem constant byte address 0x4 - core index']
  #allocation1 [shape = 'u32[144,128]{1,0:T(1,128)}', space=vmem, size = 0x12000, scoped, tag = 'internal scratch']
  #allocation2 [shape = 'f32[32,1]{1,0:T(8,128)}', space=vmem, size = 0x4000, scoped, tag = 'scratch operand']
  #allocation3 [shape = 'f32[32,1]{1,0:T(8,128)}', space=vmem, size = 0x4000, scoped, tag = 'scratch operand']
  %s0 = inlined_call_operand.hbm [shape: f32[2,32,64], index: 0, kind: input, shape index: {}]
  %s1 = inlined_call_operand.hbm [shape: f32[32,1], index: 1, kind: input, shape index: {}]
  %s2 = inlined_call_operand.hbm [shape: f32[32,1], index: 2, kind: input, shape index: {}]
  %s3 = inlined_call_operand.hbm [shape: f32[2,32,1], index: 3, kind: output, shape index: {0}]
  %s4 = inlined_call_operand.hbm [shape: f32[2,32,1], index: 4, kind: output, shape index: {1}]
  %5 = xla_tuple %s3, %s4
  %s6 = sld [smem:[#allocation0]]
  $region73: #{tpu_custom_call.1} parent=0
    _
  %s8 = ssub.s32 1, %s6
  %s9 = scalar_select 0, %s8, %s6
  $region1: #{tpu_custom_call.1} parent=0
    #allocation4 [shape = 'u8[32768]{0}', space=vmem, size = 0x8000, scoped, tag = 'input window, operand 0']
    #allocation5 [shape = 's32[2]{0}', space=sflag, size = 0x8, scoped, tag = 'scoped memory for tpu_custom_call.1']
    #allocation6 [shape = 's32[2]{0}', space=sflag, size = 0x8, scoped, tag = 'scoped memory for tpu_custom_call.1']
    #allocation7 [shape = 'u8[16384]{0}', space=vmem, size = 0x4000, scoped, tag = 'input window, operand 1, single buffered']
    #allocation8 [shape = 's32[1]{0}', space=sflag, size = 0x4, scoped, tag = 'scoped memory for tpu_custom_call.1']
    #allocation9 [shape = 'u8[16384]{0}', space=vmem, size = 0x4000, scoped, tag = 'input window, operand 2, single buffered']
    #allocation10 [shape = 'u8[32768]{0}', space=vmem, size = 0x8000, scoped, tag = 'output window, operand 0']
    #allocation11 [shape = 'u8[32768]{0}', space=vmem, size = 0x8000, scoped, tag = 'output window, operand 1']
    #allocation12 [shape = 's32[2]{0}', space=sflag, size = 0x8, scoped, tag = 'scoped memory for tpu_custom_call.1']
    %10 = vsyncpa [#allocation5], 0
    %s11 = scalar_lea.sflag [#allocation5], 1
    %12 = vsyncpa %s11, 0
    %13 = vsyncpa [#allocation8], 0
    %14 = vsyncpa [#allocation6], 0
    %s15 = scalar_lea.sflag [#allocation6], 1
    %16 = vsyncpa %s15, 0
    %17 = vsyncpa [#allocation12], 0
    %s18 = scalar_lea.sflag [#allocation12], 1
    %19 = vsyncpa %s18, 0
    loop: start=0, step=1, limit=4
    $region2: #{tpu_custom_call.1} parent=1 // loop_pre_header
      _
    $region3: #{tpu_custom_call.1} parent=1 // loop_header
      %s21 = sphi 0, %s25
      %p22 = scmp.ge.s32.totalorder %s21, 4
      %s28 = sphi 0, %s40
      %s29 = sphi 0, %s36
      %s30 = sphi 0, %s28
      %s31 = sphi 0, %s29
      %s32 = sphi 0, %s30
      %s33 = sphi 0, %s31
      %s45 = sphi 0, %s47
      %s48 = sphi 0, %s45
      %s49 = sphi 0, %s48
      %s65 = sphi 0, %s49
      %s69 = sphi 0, %s69
      %s71 = sphi 0, %s69
      %s72 = sphi 0, %s71
      %s86 = sphi 0, %s72
      %s90 = sphi 0, %s90
      %s92 = sphi 0, %s90
      %s93 = sphi 0, %s92
      %s107 = sphi 0, %s93
      %s113 = sphi 0, %s115
      %s116 = sphi 0, %s113
      %s117 = sphi 0, %s116
      %s133 = sphi 0, %s117
      %s139 = sphi 0, %s141
      %s142 = sphi 0, %s139
      %s143 = sphi 0, %s142
      %s159 = sphi 0, %s143
    $region4: #{tpu_custom_call.1} parent=1 // loop_header_branch
      %24 = sbr.rel (%p22) target = $region8
    $region5: #{tpu_custom_call.1} parent=1 // loop_body
      %s26 = ssub.s32 %s21, 1
      %s27 = ssub.s32 %s21, 2
      %s34 = sadd.s32 1, %s29
      %p35 = scmp.ge.s32.totalorder %s34, 1
      %s36 = scalar_select %p35, 0, %s34
      %s37 = sadd.s32 1, %s28
      %s38 = scalar_select %p35, %s37, %s28
      %p39 = scmp.ge.s32.totalorder %s38, 2
      %s40 = scalar_select %p39, 0, %s38
      %s41 = ssub.s32 %s28, %s40
      %s42 = ssub.s32 %s29, %s36
      %s43 = sor.u32 %s41, %s42
      %p44 = scmp.eq.s32.totalorder %s43, 0
      %s46 = sadd.s32 %s45, 1
      %s47 = scalar_select %p44, %s45, %s46
      %p50 = pneg %p44
      %p51 = scmp.eq.s32.totalorder %s21, 1
      %p52 = por %p50, %p51
      %p53 = scmp.ne.s32.totalorder %s45, %s48
      %p54 = scmp.eq.s32.totalorder %s21, 0
      %p55 = por %p53, %p54
      %p56 = scmp.ne.s32.totalorder %s45, %s48
      %p57 = scmp.eq.s32.totalorder %s26, 1
      %p58 = por %p56, %p57
      %p59 = scmp.ne.s32.totalorder %s48, %s49
      %p60 = scmp.eq.s32.totalorder %s26, 0
      %p61 = por %p59, %p60
      %p62 = scmp.ne.s32.totalorder %s48, %s49
      %p63 = scmp.eq.s32.totalorder %s27, 1
      %p64 = por %p62, %p63
      %p66 = scmp.ne.s32.totalorder %s49, %s65
      %p67 = scmp.eq.s32.totalorder %s27, 0
      %p68 = por %p66, %p67
      %s70 = sadd.s32 %s69, 1
      %p73 = scmp.eq.s32.totalorder %s21, 1
      %p74 = scmp.ne.s32.totalorder %s69, %s71
      %p75 = scmp.eq.s32.totalorder %s21, 0
      %p76 = por %p74, %p75
      %p77 = scmp.ne.s32.totalorder %s69, %s71
      %p78 = scmp.eq.s32.totalorder %s26, 1
      %p79 = por %p77, %p78
      %p80 = scmp.ne.s32.totalorder %s71, %s72
      %p81 = scmp.eq.s32.totalorder %s26, 0
      %p82 = por %p80, %p81
      %p83 = scmp.ne.s32.totalorder %s71, %s72
      %p84 = scmp.eq.s32.totalorder %s27, 1
      %p85 = por %p83, %p84
      %p87 = scmp.ne.s32.totalorder %s72, %s86
      %p88 = scmp.eq.s32.totalorder %s27, 0
      %p89 = por %p87, %p88
      %s91 = sadd.s32 %s90, 1
      %p94 = scmp.eq.s32.totalorder %s21, 1
      %p95 = scmp.ne.s32.totalorder %s90, %s92
      %p96 = scmp.eq.s32.totalorder %s21, 0
      %p97 = por %p95, %p96
      %p98 = scmp.ne.s32.totalorder %s90, %s92
      %p99 = scmp.eq.s32.totalorder %s26, 1
      %p100 = por %p98, %p99
      %p101 = scmp.ne.s32.totalorder %s92, %s93
      %p102 = scmp.eq.s32.totalorder %s26, 0
      %p103 = por %p101, %p102
      %p104 = scmp.ne.s32.totalorder %s92, %s93
      %p105 = scmp.eq.s32.totalorder %s27, 1
      %p106 = por %p104, %p105
      %p108 = scmp.ne.s32.totalorder %s93, %s107
      %p109 = scmp.eq.s32.totalorder %s27, 0
      %p110 = por %p108, %p109
      %s111 = ssub.s32 %s28, %s40
      %p112 = scmp.eq.s32.totalorder %s111, 0
      %s114 = sadd.s32 %s113, 1
      %s115 = scalar_select %p112, %s113, %s114
      %p118 = pneg %p112
      %p119 = scmp.eq.s32.totalorder %s21, 1
      %p120 = por %p118, %p119
      %p121 = scmp.ne.s32.totalorder %s113, %s116
      %p122 = scmp.eq.s32.totalorder %s21, 0
      %p123 = por %p121, %p122
      %p124 = scmp.ne.s32.totalorder %s113, %s116
      %p125 = scmp.eq.s32.totalorder %s26, 1
      %p126 = por %p124, %p125
      %p127 = scmp.ne.s32.totalorder %s116, %s117
      %p128 = scmp.eq.s32.totalorder %s26, 0
      %p129 = por %p127, %p128
      %p130 = scmp.ne.s32.totalorder %s116, %s117
      %p131 = scmp.eq.s32.totalorder %s27, 1
      %p132 = por %p130, %p131
      %p134 = scmp.ne.s32.totalorder %s117, %s133
      %p135 = scmp.eq.s32.totalorder %s27, 0
      %p136 = por %p134, %p135
      %s137 = ssub.s32 %s28, %s40
      %p138 = scmp.eq.s32.totalorder %s137, 0
      %s140 = sadd.s32 %s139, 1
      %s141 = scalar_select %p138, %s139, %s140
      %p144 = pneg %p138
      %p145 = scmp.eq.s32.totalorder %s21, 1
      %p146 = por %p144, %p145
      %p147 = scmp.ne.s32.totalorder %s139, %s142
      %p148 = scmp.eq.s32.totalorder %s21, 0
      %p149 = por %p147, %p148
      %p150 = scmp.ne.s32.totalorder %s139, %s142
      %p151 = scmp.eq.s32.totalorder %s26, 1
      %p152 = por %p150, %p151
      %p153 = scmp.ne.s32.totalorder %s142, %s143
      %p154 = scmp.eq.s32.totalorder %s26, 0
      %p155 = por %p153, %p154
      %p156 = scmp.ne.s32.totalorder %s142, %s143
      %p157 = scmp.eq.s32.totalorder %s27, 1
      %p158 = por %p156, %p157
      %p160 = scmp.ne.s32.totalorder %s143, %s159
      %p161 = scmp.eq.s32.totalorder %s27, 0
      %p162 = por %p160, %p161
      %p163 = scmp.le.s32.totalorder 1, %s21
      %p164 = scmp.lt.s32.totalorder %s21, 3
      %p165 = pnand %p163, %p164
      %p166 = pneg %p165
      // Predicated region
      $region9: #{tpu_custom_call.1} parent=5 // pred_check
        _
      $region10: #{tpu_custom_call.1} parent=5 // pred_check_branch
        %168 = sbr.rel (%p165) target = $region12
      $region11: #{tpu_custom_call.1} parent=5 // pred_region
        %s169 = ssub.s32 %s21, 1
        // Predicated region
        $region13: #{tpu_custom_call.1} parent=11 // pred_check
          %p170 = pneg %p82
        $region14: #{tpu_custom_call.1} parent=11 // pred_check_branch
          %172 = sbr.rel (%p170) target = $region16
        $region15: #{tpu_custom_call.1} parent=11 // pred_region
          %s174 = ssub.s32 512, 512
          %175 = vsyncadd [#allocation8], %s174
          %s176 = sshll.u32 [#allocation7], 4
          %s177 = int_to_ptr.vmem [resolvable:$true] %s176
          %182 = dma.hbm_to_vmem [thread:$0]  %s1, 512, %s177, [#allocation8], 128, 128, 8
        $region16: #{tpu_custom_call.1} parent=11 // pred_fallthru
          _
        // Predicated region
        $region17: #{tpu_custom_call.1} parent=11 // pred_check
          %p183 = pneg %p103
        $region18: #{tpu_custom_call.1} parent=11 // pred_check_branch
          %185 = sbr.rel (%p183) target = $region20
        $region19: #{tpu_custom_call.1} parent=11 // pred_region
          %s187 = ssub.s32 512, 512
          %188 = vsyncadd [#allocation8], %s187
          %s189 = sshll.u32 [#allocation9], 4
          %s190 = int_to_ptr.vmem [resolvable:$true] %s189
          %195 = dma.hbm_to_vmem [thread:$0]  %s2, 512, %s190, [#allocation8], 128, 128, 8
        $region20: #{tpu_custom_call.1} parent=11 // pred_fallthru
          _
      $region12: #{tpu_custom_call.1} parent=5 // pred_fallthru
        _
      %p196 = scmp.lt.s32.totalorder %s21, 2
      // Predicated region
      $region21: #{tpu_custom_call.1} parent=5 // pred_check
        %p197 = pneg %p196
      $region22: #{tpu_custom_call.1} parent=5 // pred_check_branch
        %199 = sbr.rel (%p197) target = $region24
      $region23: #{tpu_custom_call.1} parent=5 // pred_region
        // Predicated region
        $region25: #{tpu_custom_call.1} parent=23 // pred_check
          %p200 = pneg %p55
        $region26: #{tpu_custom_call.1} parent=23 // pred_check_branch
          %202 = sbr.rel (%p200) target = $region28
        $region27: #{tpu_custom_call.1} parent=23 // pred_region
          %s203 = sand.u32 %s45, 1
          %s204 = scalar_lea.sflag [#allocation5], %s203
          %s205 = sand.u32 %s45, 1
          %s206 = smul.addr %s205, 32
          %s207 = scalar_lea.vmem [#allocation4], %s206
          %s209 = ssub.s32 512, 512
          %210 = vsyncadd %s204, %s209
          %s211 = smul.addr %s28, 4
          %s212 = sadd.s32 %s29, %s211
          %s213 = smul.addr %s212, 128
          %s214 = scalar_lea.hbm %s0, %s213
          %s215 = sshll.u32 %s207, 4
          %s216 = int_to_ptr.vmem [resolvable:$true] %s215
          %221 = dma.hbm_to_vmem [thread:$0]  %s214, 512, %s216, %s204, 128, 128, 8
        $region28: #{tpu_custom_call.1} parent=23 // pred_fallthru
          _
      $region24: #{tpu_custom_call.1} parent=5 // pred_fallthru
        _
      %p222 = scmp.le.s32.totalorder 1, %s21
      %p223 = scmp.lt.s32.totalorder %s21, 3
      %p224 = pnand %p222, %p223
      %p225 = pneg %p224
      // Predicated region
      $region29: #{tpu_custom_call.1} parent=5 // pred_check
        _
      $region30: #{tpu_custom_call.1} parent=5 // pred_check_branch
        %227 = sbr.rel (%p224) target = $region32
      $region31: #{tpu_custom_call.1} parent=5 // pred_region
        %s228 = ssub.s32 %s21, 1
        %s229 = sand.u32 %s48, 1
        %s230 = scalar_lea.sflag [#allocation5], %s229
        %s231 = sand.u32 %s48, 1
        %s232 = smul.addr %s231, 32
        %s233 = scalar_lea.vmem [#allocation4], %s232
        // Predicated region
        $region33: #{tpu_custom_call.1} parent=31 // pred_check
          %p234 = pneg %p61
        $region34: #{tpu_custom_call.1} parent=31 // pred_check_branch
          %236 = sbr.rel (%p234) target = $region36
        $region35: #{tpu_custom_call.1} parent=31 // pred_region
          %237 = dma.done %s230, 512
        $region36: #{tpu_custom_call.1} parent=31 // pred_fallthru
          _
        // Predicated region
        $region37: #{tpu_custom_call.1} parent=31 // pred_check
          %p238 = pneg %p82
        $region38: #{tpu_custom_call.1} parent=31 // pred_check_branch
          %240 = sbr.rel (%p238) target = $region40
        $region39: #{tpu_custom_call.1} parent=31 // pred_region
          %241 = dma.done [#allocation8], 512
        $region40: #{tpu_custom_call.1} parent=31 // pred_fallthru
          _
        // Predicated region
        $region41: #{tpu_custom_call.1} parent=31 // pred_check
          %p242 = pneg %p103
        $region42: #{tpu_custom_call.1} parent=31 // pred_check_branch
          %244 = sbr.rel (%p242) target = $region44
        $region43: #{tpu_custom_call.1} parent=31 // pred_region
          %245 = dma.done [#allocation8], 512
        $region44: #{tpu_custom_call.1} parent=31 // pred_fallthru
          _
        %s246 = sand.u32 %s48, 1
        %s247 = scalar_lea.sflag [#allocation5], %s246
        %s248 = sand.u32 %s48, 1
        %s249 = smul.addr %s248, 32
        %s250 = scalar_lea.vmem [#allocation4], %s249
        %p251 = pneg %p61
        %p252 = pneg %p58
        %p253 = pneg %p82
        %p254 = pneg %p79
        %p255 = pneg %p103
        %p256 = pneg %p100
        %p257 = pneg %p129
        %p258 = pneg %p126
        %s259 = sand.u32 %s116, 1
        %s260 = scalar_lea.sflag [#allocation6], %s259
        %s261 = sand.u32 %s116, 1
        %s262 = smul.addr %s261, 32
        %s263 = scalar_lea.vmem [#allocation10], %s262
        %p264 = pneg %p155
        %p265 = pneg %p152
        %s266 = sand.u32 %s142, 1
        %s267 = scalar_lea.sflag [#allocation12], %s266
        %s268 = sand.u32 %s142, 1
        %s269 = smul.addr %s268, 32
        %s270 = scalar_lea.vmem [#allocation11], %s269
        %p271 = scmp.eq.s32.totalorder %s31, 0
        // Predicated region
        $region45: #{tpu_custom_call.1} parent=31 // pred_check
          %p272 = pneg %p271
        $region46: #{tpu_custom_call.1} parent=31 // pred_check_branch
          %274 = sbr.rel (%p272) target = $region48
        $region47: #{tpu_custom_call.1} parent=31 // pred_region
          %vm275 = vcmask 7168
          %276 = vst.msk [vmem:[#allocation2] sm:$0xff] %vm275, 0.0
          %277 = vst.msk [vmem:[#allocation2 + $0x8] sm:$0xff] %vm275, 0.0
          %278 = vst.msk [vmem:[#allocation2 + $0x10] sm:$0xff] %vm275, 0.0
          %279 = vst.msk [vmem:[#allocation2 + $0x18] sm:$0xff] %vm275, 0.0
          %280 = vst.msk [vmem:[#allocation3] sm:$0xff] %vm275, 0.0
          %281 = vst.msk [vmem:[#allocation3 + $0x8] sm:$0xff] %vm275, 0.0
          %282 = vst.msk [vmem:[#allocation3 + $0x10] sm:$0xff] %vm275, 0.0
          %283 = vst.msk [vmem:[#allocation3 + $0x18] sm:$0xff] %vm275, 0.0
        $region48: #{tpu_custom_call.1} parent=31 // pred_fallthru
          _
        %v284 = vld [vmem:[%s233] sm:$0xff]
        %v285 = vld [vmem:[%s233 + $0x8] sm:$0xff]
        %v286 = vld [vmem:[%s233 + $0x10] sm:$0xff]
        %v287 = vld [vmem:[%s233 + $0x18] sm:$0xff]
        %v288 = vld [vmem:[#allocation2] sm:$0xff]
        %v289 = vld [vmem:[#allocation2 + $0x8] sm:$0xff]
        %v290 = vld [vmem:[#allocation2 + $0x10] sm:$0xff]
        %v291 = vld [vmem:[#allocation2 + $0x18] sm:$0xff]
        %vm292 = vcmask 523264
        %v293 = vsel %vm292, %v284, 0.0
        %294 = vadd.xlane.f32.xlu0 %v293
        %v295 = vpop.xlane.xlu0 %294
        %v296 = vsel %vm292, %v285, 0.0
        %297 = vadd.xlane.f32.xlu0 %v296
        %v298 = vpop.xlane.xlu0 %297
        %v299 = vsel %vm292, %v286, 0.0
        %300 = vadd.xlane.f32.xlu0 %v299
        %v301 = vpop.xlane.xlu0 %300
        %v302 = vsel %vm292, %v287, 0.0
        %303 = vadd.xlane.f32.xlu0 %v302
        %v304 = vpop.xlane.xlu0 %303
        %v305 = vadd.f32 %v288, %v295
        %v306 = vadd.f32 %v289, %v298
        %v307 = vadd.f32 %v290, %v301
        %v308 = vadd.f32 %v291, %v304
        %vm309 = vcmask 7168
        %310 = vst.msk [vmem:[#allocation2] sm:$0xff] %vm309, %v305
        %311 = vst.msk [vmem:[#allocation2 + $0x8] sm:$0xff] %vm309, %v306
        %312 = vst.msk [vmem:[#allocation2 + $0x10] sm:$0xff] %vm309, %v307
        %313 = vst.msk [vmem:[#allocation2 + $0x18] sm:$0xff] %vm309, %v308
        %v314 = vld [vmem:[#allocation3] sm:$0xff]
        %v315 = vld [vmem:[#allocation3 + $0x8] sm:$0xff]
        %v316 = vld [vmem:[#allocation3 + $0x10] sm:$0xff]
        %v317 = vld [vmem:[#allocation3 + $0x18] sm:$0xff]
        %v318 = vmul.f32 %v284, %v284
        %v319 = vmul.f32 %v285, %v285
        %v320 = vmul.f32 %v286, %v286
        %v321 = vmul.f32 %v287, %v287
        %v322 = vsel %vm292, %v318, 0.0
        %323 = vadd.xlane.f32.xlu0 %v322
        %v324 = vpop.xlane.xlu0 %323
        %v325 = vsel %vm292, %v319, 0.0
        %326 = vadd.xlane.f32.xlu0 %v325
        %v327 = vpop.xlane.xlu0 %326
        %v328 = vsel %vm292, %v320, 0.0
        %329 = vadd.xlane.f32.xlu0 %v328
        %v330 = vpop.xlane.xlu0 %329
        %v331 = vsel %vm292, %v321, 0.0
        %332 = vadd.xlane.f32.xlu0 %v331
        %v333 = vpop.xlane.xlu0 %332
        %v334 = vadd.f32 %v314, %v324
        %v335 = vadd.f32 %v315, %v327
        %v336 = vadd.f32 %v316, %v330
        %v337 = vadd.f32 %v317, %v333
        %338 = vst.msk [vmem:[#allocation3] sm:$0xff] %vm309, %v334
        %339 = vst.msk [vmem:[#allocation3 + $0x8] sm:$0xff] %vm309, %v335
        %340 = vst.msk [vmem:[#allocation3 + $0x10] sm:$0xff] %vm309, %v336
        %341 = vst.msk [vmem:[#allocation3 + $0x18] sm:$0xff] %vm309, %v337
        // Predicated region
        $region49: #{tpu_custom_call.1} parent=31 // pred_check
          %p342 = pneg %p271
        $region50: #{tpu_custom_call.1} parent=31 // pred_check_branch
          %344 = sbr.rel (%p342) target = $region52
        $region51: #{tpu_custom_call.1} parent=31 // pred_region
          %v345 = vld [vmem:[#allocation2] sm:$0xff]
          %v346 = vld [vmem:[#allocation2 + $0x8] sm:$0xff]
          %v347 = vld [vmem:[#allocation2 + $0x10] sm:$0xff]
          %v348 = vld [vmem:[#allocation2 + $0x18] sm:$0xff]
          %v349 = vld [vmem:[#allocation3] sm:$0xff]
          %v350 = vld [vmem:[#allocation3 + $0x8] sm:$0xff]
          %v351 = vld [vmem:[#allocation3 + $0x10] sm:$0xff]
          %v352 = vld [vmem:[#allocation3 + $0x18] sm:$0xff]
          %v353 = vadd.f32 %v345, 0.0
          %v354 = vadd.f32 %v346, 0.0
          %v355 = vadd.f32 %v347, 0.0
          %v356 = vadd.f32 %v348, 0.0
          %v357 = vadd.f32 %v349, 0.0
          %v358 = vadd.f32 %v350, 0.0
          %v359 = vadd.f32 %v351, 0.0
          %v360 = vadd.f32 %v352, 0.0
          %v361 = vrcp.pop 64.0
          %v362 = vmul.f32 %v353, %v361
          %v363 = vmul.f32 %v354, %v361
          %v364 = vmul.f32 %v355, %v361
          %v365 = vmul.f32 %v356, %v361
          %v366 = vmul.f32 %v357, %v361
          %v367 = vmul.f32 %v358, %v361
          %v368 = vmul.f32 %v359, %v361
          %v369 = vmul.f32 %v360, %v361
          %v370 = vmul.f32 %v362, %v362
          %v371 = vmul.f32 %v363, %v363
          %v372 = vmul.f32 %v364, %v364
          %v373 = vmul.f32 %v365, %v365
          %v374 = vsub.f32 %v366, %v370
          %v375 = vsub.f32 %v367, %v371
          %v376 = vsub.f32 %v368, %v372
          %v377 = vsub.f32 %v369, %v373
          %v378 = vmax.f32 %v374, 0.0
          %v379 = vmax.f32 %v375, 0.0
          %v380 = vmax.f32 %v376, 0.0
          %v381 = vmax.f32 %v377, 0.0
          %v382 = vadd.f32 %v378, 1e-05
          %v383 = vadd.f32 %v379, 1e-05
          %v384 = vadd.f32 %v380, 1e-05
          %v385 = vadd.f32 %v381, 1e-05
          %v386 = vrsqrt.pop %v382
          %v387 = vrsqrt.pop %v383
          %v388 = vrsqrt.pop %v384
          %v389 = vrsqrt.pop %v385
          %v390 = vld [vmem:[#allocation7] sm:$0xff]
          %v391 = vld [vmem:[#allocation7 + $0x8] sm:$0xff]
          %v392 = vld [vmem:[#allocation7 + $0x10] sm:$0xff]
          %v393 = vld [vmem:[#allocation7 + $0x18] sm:$0xff]
          %v394 = vld [vmem:[#allocation9] sm:$0xff]
          %v395 = vld [vmem:[#allocation9 + $0x8] sm:$0xff]
          %v396 = vld [vmem:[#allocation9 + $0x10] sm:$0xff]
          %v397 = vld [vmem:[#allocation9 + $0x18] sm:$0xff]
          %v398 = vmul.f32 %v386, %v390
          %v399 = vmul.f32 %v387, %v391
          %v400 = vmul.f32 %v388, %v392
          %v401 = vmul.f32 %v389, %v393
          %v402 = vmul.f32 %v362, %v398
          %v403 = vmul.f32 %v363, %v399
          %v404 = vmul.f32 %v364, %v400
          %v405 = vmul.f32 %v365, %v401
          %v406 = vsub.f32 %v394, %v402
          %v407 = vsub.f32 %v395, %v403
          %v408 = vsub.f32 %v396, %v404
          %v409 = vsub.f32 %v397, %v405
          %410 = vst.msk [vmem:[%s263] sm:$0xff] %vm309, %v398
          %411 = vst.msk [vmem:[%s263 + $0x8] sm:$0xff] %vm309, %v399
          %412 = vst.msk [vmem:[%s263 + $0x10] sm:$0xff] %vm309, %v400
          %413 = vst.msk [vmem:[%s263 + $0x18] sm:$0xff] %vm309, %v401
          %414 = vst.msk [vmem:[%s270] sm:$0xff] %vm309, %v406
          %415 = vst.msk [vmem:[%s270 + $0x8] sm:$0xff] %vm309, %v407
          %416 = vst.msk [vmem:[%s270 + $0x10] sm:$0xff] %vm309, %v408
          %417 = vst.msk [vmem:[%s270 + $0x18] sm:$0xff] %vm309, %v409
        $region52: #{tpu_custom_call.1} parent=31 // pred_fallthru
          _
        %s418 = sand.u32 %s116, 1
        %s419 = scalar_lea.sflag [#allocation6], %s418
        %s420 = sand.u32 %s116, 1
        %s421 = smul.addr %s420, 32
        %s422 = scalar_lea.vmem [#allocation10], %s421
        %s423 = sand.u32 %s142, 1
        %s424 = scalar_lea.sflag [#allocation12], %s423
        %s425 = sand.u32 %s142, 1
        %s426 = smul.addr %s425, 32
        %s427 = scalar_lea.vmem [#allocation11], %s426
        // Predicated region
        $region53: #{tpu_custom_call.1} parent=31 // pred_check
          %p428 = pneg %p126
        $region54: #{tpu_custom_call.1} parent=31 // pred_check_branch
          %430 = sbr.rel (%p428) target = $region56
        $region55: #{tpu_custom_call.1} parent=31 // pred_region
          %s432 = ssub.s32 512, 512
          %433 = vsyncadd %s419, %s432
          %s434 = smul.addr %s30, 4
          %s435 = smul.addr %s434, 128
          %s436 = scalar_lea.hbm %s3, %s435
          %s437 = sshll.u32 %s422, 4
          %s438 = int_to_ptr.vmem [resolvable:$true] %s437
          %443 = dma.vmem_to_hbm [thread:$0]  %s438, 512, %s436, %s419, 128, 128, 8
        $region56: #{tpu_custom_call.1} parent=31 // pred_fallthru
          _
        // Predicated region
        $region57: #{tpu_custom_call.1} parent=31 // pred_check
          %p444 = pneg %p152
        $region58: #{tpu_custom_call.1} parent=31 // pred_check_branch
          %446 = sbr.rel (%p444) target = $region60
        $region59: #{tpu_custom_call.1} parent=31 // pred_region
          %s448 = ssub.s32 512, 512
          %449 = vsyncadd %s424, %s448
          %s450 = smul.addr %s30, 4
          %s451 = smul.addr %s450, 128
          %s452 = scalar_lea.hbm %s4, %s451
          %s453 = sshll.u32 %s427, 4
          %s454 = int_to_ptr.vmem [resolvable:$true] %s453
          %459 = dma.vmem_to_hbm [thread:$0]  %s454, 512, %s452, %s424, 128, 128, 8
        $region60: #{tpu_custom_call.1} parent=31 // pred_fallthru
          _
      $region32: #{tpu_custom_call.1} parent=5 // pred_fallthru
        _
      %p460 = scmp.le.s32.totalorder 2, %s21
      // Predicated region
      $region61: #{tpu_custom_call.1} parent=5 // pred_check
        %p461 = pneg %p460
      $region62: #{tpu_custom_call.1} parent=5 // pred_check_branch
        %463 = sbr.rel (%p461) target = $region64
      $region63: #{tpu_custom_call.1} parent=5 // pred_region
        %s464 = ssub.s32 %s21, 2
        // Predicated region
        $region65: #{tpu_custom_call.1} parent=63 // pred_check
          %p465 = pneg %p132
        $region66: #{tpu_custom_call.1} parent=63 // pred_check_branch
          %467 = sbr.rel (%p465) target = $region68
        $region67: #{tpu_custom_call.1} parent=63 // pred_region
          %s468 = sand.u32 %s117, 1
          %s469 = scalar_lea.sflag [#allocation6], %s468
          %s470 = sand.u32 %s117, 1
          %s471 = smul.addr %s470, 32
          %s472 = scalar_lea.vmem [#allocation10], %s471
          %473 = dma.done %s469, 512
        $region68: #{tpu_custom_call.1} parent=63 // pred_fallthru
          _
        // Predicated region
        $region69: #{tpu_custom_call.1} parent=63 // pred_check
          %p474 = pneg %p158
        $region70: #{tpu_custom_call.1} parent=63 // pred_check_branch
          %476 = sbr.rel (%p474) target = $region72
        $region71: #{tpu_custom_call.1} parent=63 // pred_region
          %s477 = sand.u32 %s143, 1
          %s478 = scalar_lea.sflag [#allocation12], %s477
          %s479 = sand.u32 %s143, 1
          %s480 = smul.addr %s479, 32
          %s481 = scalar_lea.vmem [#allocation11], %s480
          %482 = dma.done %s478, 512
        $region72: #{tpu_custom_call.1} parent=63 // pred_fallthru
          _
      $region64: #{tpu_custom_call.1} parent=5 // pred_fallthru
        _
    $region6: #{tpu_custom_call.1} parent=1 // loop_footer
      %s25 = sadd.s32 1, %s21
    $region7: #{tpu_custom_call.1} parent=1 // loop_footer_branch
      %20 = sbr.rel target = $region3
    $region8: #{tpu_custom_call.1} parent=1 // loop_exit
      _
    %483 = vsyncpa [#allocation5], 1
    %s484 = scalar_lea.sflag [#allocation5], 1
    %485 = vsyncpa %s484, 1
    %486 = vsyncpa [#allocation8], 1
    %487 = vsyncpa [#allocation6], 1
    %s488 = scalar_lea.sflag [#allocation6], 1
    %489 = vsyncpa %s488, 1
    %490 = vsyncpa [#allocation12], 1
    %s491 = scalar_lea.sflag [#allocation12], 1
    %492 = vsyncpa %s491, 1

</llo_original>
